<compile_context>
chip_gen: v7x
topology: tpu7x:2x2x1
jax: 0.10.0
libtpu: 0.0.40
codegen_flags: <defaults>
</compile_context>

<pallas_src>
import functools

import jax
import jax.numpy as jnp
from jax.experimental import pallas as pl
from jax.experimental.pallas import tpu as pltpu


_LANE = 512                        # flat path: lane extent per tile (multiple of 128)
_MAX_TILE_ROWS = 1024              # flat path: sublane rows per grid step (mult of 32)
_TARGET_PX_PER_TILE = 512 * 1024   # NCHW path: ~512K px per step (~2 MiB / f32 plane)
_VMEM_LIMIT_BYTES = 32 * 1024 * 1024


def _round_up(x, m):
    return ((x + m - 1) // m) * m


def _cdiv(a, b):
    return -(-a // b)


# --------------------------------------------------------------------------- shared math

def _partial_rows(lb, lv, t, valid, *, q, temperature, eps):
    """Per-tile seesaw partials shared by both kernels.

    lb / lv : unscaled f32 logits (rows, lanes)  — background / vessel
    t       : int32 targets, same shape
    valid   : bool mask (same shape) or None (everything valid)

    Returns four (1, lanes) f32 rows (reduced over the sublane axis):
      vessel-loss partial, background-loss partial, vessel count, background count.
    """
    is_v = t == 1
    is_b = t == 0
    if valid is not None:
        is_v = jnp.logical_and(is_v, valid)
        is_b = jnp.logical_and(is_b, valid)

    lb_s = lb * temperature
    lv_s = lv * temperature

    # -log(p_gt) == log(exp_b + exp_v + eps) - l_gt   (no reciprocal, no second log)
    log_denom = jnp.log(jnp.exp(lb_s) + jnp.exp(lv_s) + eps)
    l_gt = jnp.where(is_v, lv_s, lb_s)

    # Compensation factor of the GT class:
    #   (p_other / p_gt)^q == exp(q*T*(l_other - l_gt))   (the eps'd denom cancels)
    d = lb - lv                          # unscaled diff; q*T folded statically below
    s = jnp.where(is_v, d, -d)
    comp = jnp.clip(jnp.exp((q * temperature) * s), 1.0, 5.0)

    loss = (log_denom - l_gt) * comp     # only the ground-truth branch, branchless

    zero = jnp.zeros_like(loss)
    one = jnp.ones_like(loss)
    sv = jnp.sum(jnp.where(is_v, loss, zero), axis=0, keepdims=True)
    sb = jnp.sum(jnp.where(is_b, loss, zero), axis=0, keepdims=True)
    cv = jnp.sum(jnp.where(is_v, one, zero), axis=0, keepdims=True)
    cb = jnp.sum(jnp.where(is_b, one, zero), axis=0, keepdims=True)
    return sv, sb, cv, cb


# --------------------------------------------------------------------------- NCHW path

def _seesaw_nchw_kernel(l_ref, t_ref, out_ref, *, q, temperature, eps,
                        single_logit, tile_h, H, need_mask):
    if single_logit:
        lv = l_ref[0, 0].astype(jnp.float32)
        lb = -lv                                   # background logit = -vessel logit
    else:
        lb = l_ref[0, 0].astype(jnp.float32)       # channel 0: background
        lv = l_ref[0, 1].astype(jnp.float32)       # channel 1: vessel / target

    t = t_ref[0].astype(jnp.int32)

    valid = None
    if need_mask:                                  # ragged H tail of the last block
        h = pl.program_id(1)
        row = jax.lax.broadcasted_iota(jnp.int32, t.shape, 0)
        valid = (h * tile_h + row) < H

    sv, sb, cv, cb = _partial_rows(lb, lv, t, valid, q=q,
                                   temperature=temperature, eps=eps)
    out_ref[0, 0, 0:1, :] = sv
    out_ref[0, 0, 1:2, :] = sb
    out_ref[0, 0, 2:3, :] = cv
    out_ref[0, 0, 3:4, :] = cb


def _seesaw_nchw(logits, targets, single_logit, q, temperature, eps):
    """Direct-NCHW path (no HBM repack). Requires W % 128 == 0."""
    B, C, H, W = logits.shape

    max_th = max(32, (_TARGET_PX_PER_TILE // W) // 32 * 32)
    if H <= max_th:
        tile_h = H                                  # full-dim block, no tail masking
    else:
        tile_h = max_th                             # multiple of 32 (f32/bf16/int8 safe)
    grid_h = _cdiv(H, tile_h)
    need_mask = (H % tile_h) != 0

    kernel = functools.partial(
        _seesaw_nchw_kernel, q=q, temperature=temperature, eps=eps,
        single_logit=single_logit, tile_h=tile_h, H=H, need_mask=need_mask)

    # NOTE(v7x): grid is marked "parallel"; if profiling shows only one TensorCore
    # is used there, switch the tile axis to pltpu.CORE_PARALLEL.
    out = pl.pallas_call(
        kernel,
        out_shape=jax.ShapeDtypeStruct((B, grid_h, 4, W), jnp.float32),
        grid=(B, grid_h),
        in_specs=[
            pl.BlockSpec((1, C, tile_h, W), lambda b, h: (b, 0, h, 0)),
            pl.BlockSpec((1, tile_h, W), lambda b, h: (b, h, 0)),
        ],
        out_specs=pl.BlockSpec((1, 1, 4, W), lambda b, h: (b, h, 0, 0)),
        compiler_params=pltpu.CompilerParams(
            dimension_semantics=("parallel", "parallel"),
            vmem_limit_bytes=_VMEM_LIMIT_BYTES),
    )(logits, targets)
    return jnp.sum(out, axis=(0, 1, 3))             # -> (4,)


# --------------------------------------------------------------------------- flat path

def _seesaw_flat_kernel(*refs, q, temperature, eps, single_logit,
                        tile_rows, n_pix, need_mask):
    if single_logit:
        lv_ref, t_ref, out_ref = refs
        lv = lv_ref[...].astype(jnp.float32)
        lb = -lv
    else:
        lb_ref, lv_ref, t_ref, out_ref = refs
        lb = lb_ref[...].astype(jnp.float32)
        lv = lv_ref[...].astype(jnp.float32)

    t = t_ref[...].astype(jnp.int32)

    valid = None
    if need_mask:                                   # padded tail of the flat layout
        g = pl.program_id(0)
        row = jax.lax.broadcasted_iota(jnp.int32, (tile_rows, _LANE), 0)
        col = jax.lax.broadcasted_iota(jnp.int32, (tile_rows, _LANE), 1)
        valid = ((g * tile_rows + row) * _LANE + col) < n_pix

    sv, sb, cv, cb = _partial_rows(lb, lv, t, valid, q=q,
                                   temperature=temperature, eps=eps)
    out_ref[0, 0:1, :] = sv
    out_ref[0, 1:2, :] = sb
    out_ref[0, 2:3, :] = cv
    out_ref[0, 3:4, :] = cb


def _seesaw_flat(logits, targets, single_logit, q, temperature, eps):
    """Repack path for badly non-128-aligned W: flatten pixels to a (rows, 512) slab."""
    B, H, W = targets.shape
    n_pix = B * H * W

    if single_logit:
        planes = [logits[:, 0]]                     # vessel logit only; lb = -lv in-kernel
    else:
        planes = [logits[:, 0], logits[:, 1]]       # background, vessel

    rows = _cdiv(n_pix, _LANE)
    num_tiles = _cdiv(rows, _MAX_TILE_ROWS)
    tile_rows = _round_up(_cdiv(rows, num_tiles), 32)   # 32: f32/bf16/int8 tiling safe
    rows_pad = num_tiles * tile_rows
    n_pad = rows_pad * _LANE - n_pix
    need_mask = n_pad > 0

    def _prep(x):
        x = x.reshape(n_pix)
        if n_pad:
            x = jnp.pad(x, (0, n_pad))              # pad value irrelevant (iota mask)
        return x.reshape(rows_pad, _LANE)

    ins = [_prep(pln) for pln in planes] + [_prep(targets)]

    blk = pl.BlockSpec((tile_rows, _LANE), lambda g: (g, 0))
    kernel = functools.partial(
        _seesaw_flat_kernel, q=q, temperature=temperature, eps=eps,
        single_logit=single_logit, tile_rows=tile_rows, n_pix=n_pix,
        need_mask=need_mask)

    out = pl.pallas_call(
        kernel,
        out_shape=jax.ShapeDtypeStruct((num_tiles, 4, _LANE), jnp.float32),
        grid=(num_tiles,),
        in_specs=[blk] * len(ins),
        out_specs=pl.BlockSpec((1, 4, _LANE), lambda g: (g, 0, 0)),
        compiler_params=pltpu.CompilerParams(
            dimension_semantics=("parallel",),
            vmem_limit_bytes=_VMEM_LIMIT_BYTES),
    )(*ins)
    return jnp.sum(out, axis=(0, 2))                # -> (4,)


# --------------------------------------------------------------------------- public API

def binary_seesaw_loss(logits, targets, *, p=0.8, q=2.0, temperature=1.0):
    """Forward pass of BinarySeesawLoss. Returns a scalar f32 loss."""
    eps = 1e-6

    # Torch-style special casing.
    if targets.ndim == 4 and targets.shape[1] == 1:
        targets = jnp.squeeze(targets, axis=1)
    assert logits.shape[1] in (1, 2), "binary seesaw loss expects 1 or 2 logit channels"
    single_logit = logits.shape[1] == 1

    # Keep compact integer targets as-is (uint8/int8/int32); only fix bool / float.
    if targets.dtype == jnp.bool_:
        targets = targets.astype(jnp.uint8)
    elif not jnp.issubdtype(targets.dtype, jnp.integer):
        targets = targets.astype(jnp.int32)

    B, H, W = targets.shape
    n_pix = B * H * W

    if W % 128 == 0:
        sums = _seesaw_nchw(logits, targets, single_logit, q, temperature, eps)
    else:
        sums = _seesaw_flat(logits, targets, single_logit, q, temperature, eps)

    # Scalar epilogue: global class counts -> mitigation factors -> mean.
    s_v, s_b = sums[0], sums[1]
    n_v = sums[2] + eps
    n_b = sums[3] + eps           # counted in-kernel (robust to ignore labels)

    m_vb = jnp.minimum(1.0, (n_b / n_v) ** p)
    m_bv = jnp.maximum(jnp.minimum(1.0, (n_v / n_b) ** p), 0.1)

    return (m_vb * s_v + m_bv * s_b) / n_pix


# --------------------------------------------------------------------------- reference

def _reference_loss(logits, targets, *, p=0.8, q=2.0, temperature=1.0):
    """Pure-JAX transcription of the PyTorch forward, for validation."""
    eps = 1e-6
    if targets.ndim == 4 and targets.shape[1] == 1:
        targets = jnp.squeeze(targets, axis=1)
    if logits.shape[1] == 1:
        logits = jnp.concatenate([-logits, logits], axis=1)
    logits = logits.astype(jnp.float32) * temperature
    exp_l = jnp.exp(logits)
    probs = exp_l / (exp_l.sum(axis=1, keepdims=True) + eps)
    pb = probs[:, 0]
    pv = probs[:, 1]
    t1 = (targets == 1).astype(jnp.float32)
    t0 = (targets == 0).astype(jnp.float32)
    n_v = t1.sum() + eps
    n_b = t0.sum() + eps
    m_vb = jnp.minimum(1.0, (n_b / n_v) ** p)
    m_bv = jnp.clip(jnp.minimum(1.0, (n_v / n_b) ** p), 0.1, None)
    c_vb = jnp.clip(jnp.maximum(1.0, (pb / pv) ** q), None, 5.0)
    c_bv = jnp.clip(jnp.maximum(1.0, (pv / pb) ** q), None, 5.0)
    loss = (-t1 * jnp.log(pv + eps) * m_vb * c_vb
            - t0 * jnp.log(pb + eps) * m_bv * c_bv)
    return loss.mean()


# --------------------------------------------------------------------------- self test

if __name__ == "__main__":
    key = jax.random.PRNGKey(0)
    ks = jax.random.split(key, 8)

    loss_fn = jax.jit(binary_seesaw_loss, static_argnames=("p", "q", "temperature"))

    def _check(logits, targets):
        out = jax.block_until_ready(loss_fn(logits, targets))
        ref = _reference_loss(logits, targets)
        assert jnp.isfinite(out), out
        assert jnp.allclose(out, ref, rtol=1e-4, atol=1e-5), (out, ref)

    # Case 1: 2-channel logits, non-128-aligned W -> flat (repack) path, int32 targets.
    B, H, W = 2, 16, 16
    _check(jax.random.normal(ks[0], (B, 2, H, W), dtype=jnp.float32),
           jax.random.bernoulli(ks[1], 0.3, (B, H, W)).astype(jnp.int32))

    # Case 2: 2-channel logits, 128-aligned W -> direct NCHW path, uint8 targets.
    B, H, W = 2, 16, 128
    _check(jax.random.normal(ks[2], (B, 2, H, W), dtype=jnp.float32),
           jax.random.bernoulli(ks[3], 0.3, (B, H, W)).astype(jnp.uint8))

    # Case 3: single-logit channel, 128-aligned W -> NCHW path, in-kernel negation.
    _check(jax.random.normal(ks[4], (B, 1, H, W), dtype=jnp.float32),
           jax.random.bernoulli(ks[5], 0.4, (B, H, W)).astype(jnp.uint8))

    # Case 4: single-logit channel, non-aligned W, (B,1,H,W) targets -> flat path.
    B, H, W = 2, 16, 16
    _check(jax.random.normal(ks[6], (B, 1, H, W), dtype=jnp.float32),
           jax.random.bernoulli(ks[7], 0.5, (B, 1, H, W)).astype(jnp.int32))

    print("KERNEL_OK")
</pallas_src>

<mosaic_0001>
module attributes {stable_mosaic.version = 11 : i64} {
  func.func @_seesaw_flat_kernel(%arg0: i32, %arg1: memref<32x512xf32, #tpu.memory_space<vmem>>, %arg2: memref<32x512xf32, #tpu.memory_space<vmem>>, %arg3: memref<32x512xi32, #tpu.memory_space<vmem>>, %arg4: memref<1x4x512xf32, #tpu.memory_space<vmem>>) attributes {dimension_semantics = [#tpu.dimension_semantics<parallel>], iteration_bounds = array<i64: 1>, scalar_prefetch = 0 : i64, scratch_operands = 0 : i64, tpu.core_type = #tpu.core_type<tc>, window_params = [{transform_indices = @transform_0, window_bounds = array<i64: 32, 512>}, {transform_indices = @transform_1, window_bounds = array<i64: 32, 512>}, {transform_indices = @transform_2, window_bounds = array<i64: 32, 512>}, {transform_indices = @transform_3, window_bounds = array<i64: 1, 4, 512>}]} {
    %c0 = arith.constant 0 : index
    %c0_0 = arith.constant 0 : index
    %0 = vector.load %arg1[%c0, %c0_0] : memref<32x512xf32, #tpu.memory_space<vmem>>, vector<32x512xf32>
    %c0_1 = arith.constant 0 : index
    %c0_2 = arith.constant 0 : index
    %1 = vector.load %arg2[%c0_1, %c0_2] : memref<32x512xf32, #tpu.memory_space<vmem>>, vector<32x512xf32>
    %c0_3 = arith.constant 0 : index
    %c0_4 = arith.constant 0 : index
    %2 = vector.load %arg3[%c0_3, %c0_4] : memref<32x512xi32, #tpu.memory_space<vmem>>, vector<32x512xi32>
    %3 = tpu.iota {dimensions = array<i32: 0>} : vector<32x512xi32>
    %4 = tpu.iota {dimensions = array<i32: 1>} : vector<32x512xi32>
    %c32_i32 = arith.constant 32 : i32
    %5 = arith.muli %arg0, %c32_i32 : i32
    %6 = vector.broadcast %5 : i32 to vector<32x512xi32>
    %7 = arith.addi %6, %3 : vector<32x512xi32>
    %c512_i32 = arith.constant 512 : i32
    %8 = vector.broadcast %c512_i32 : i32 to vector<32x512xi32>
    %9 = arith.muli %7, %8 : vector<32x512xi32>
    %10 = arith.addi %9, %4 : vector<32x512xi32>
    %c512_i32_5 = arith.constant 512 : i32
    %11 = vector.broadcast %c512_i32_5 : i32 to vector<32x512xi32>
    %12 = arith.cmpi slt, %10, %11 : vector<32x512xi32>
    %c1_i32 = arith.constant 1 : i32
    %13 = vector.broadcast %c1_i32 : i32 to vector<32x512xi32>
    %14 = arith.cmpi eq, %2, %13 : vector<32x512xi32>
    %c0_i32 = arith.constant 0 : i32
    %15 = vector.broadcast %c0_i32 : i32 to vector<32x512xi32>
    %16 = arith.cmpi eq, %2, %15 : vector<32x512xi32>
    %17 = arith.andi %14, %12 : vector<32x512xi1>
    %18 = arith.andi %16, %12 : vector<32x512xi1>
    %cst = arith.constant 1.000000e+00 : f32
    %19 = vector.broadcast %cst : f32 to vector<32x512xf32>
    %20 = arith.mulf %0, %19 : vector<32x512xf32>
    %cst_6 = arith.constant 1.000000e+00 : f32
    %21 = vector.broadcast %cst_6 : f32 to vector<32x512xf32>
    %22 = arith.mulf %1, %21 : vector<32x512xf32>
    %23 = math.exp %20 : vector<32x512xf32>
    %24 = math.exp %22 : vector<32x512xf32>
    %25 = arith.addf %23, %24 : vector<32x512xf32>
    %cst_7 = arith.constant 9.99999997E-7 : f32
    %26 = vector.broadcast %cst_7 : f32 to vector<32x512xf32>
    %27 = arith.addf %25, %26 : vector<32x512xf32>
    %28 = math.log %27 : vector<32x512xf32>
    %29 = arith.select %17, %22, %20 : vector<32x512xi1>, vector<32x512xf32>
    %30 = arith.subf %0, %1 : vector<32x512xf32>
    %cst_8 = arith.constant 0.000000e+00 : f32
    %31 = vector.broadcast %cst_8 : f32 to vector<32x512xf32>
    %32 = arith.subf %31, %30 : vector<32x512xf32>
    %33 = arith.select %17, %30, %32 : vector<32x512xi1>, vector<32x512xf32>
    %cst_9 = arith.constant 2.000000e+00 : f32
    %34 = vector.broadcast %cst_9 : f32 to vector<32x512xf32>
    %35 = arith.mulf %34, %33 : vector<32x512xf32>
    %36 = math.exp %35 : vector<32x512xf32>
    %cst_10 = arith.constant 1.000000e+00 : f32
    %cst_11 = arith.constant 5.000000e+00 : f32
    %37 = vector.broadcast %cst_10 : f32 to vector<32x512xf32>
    %38 = arith.maximumf %37, %36 : vector<32x512xf32>
    %39 = vector.broadcast %cst_11 : f32 to vector<32x512xf32>
    %40 = arith.minimumf %39, %38 : vector<32x512xf32>
    %41 = arith.subf %28, %29 : vector<32x512xf32>
    %42 = arith.mulf %41, %40 : vector<32x512xf32>
    %cst_12 = arith.constant 0.000000e+00 : f32
    %43 = vector.broadcast %cst_12 : f32 to vector<32x512xf32>
    %cst_13 = arith.constant 1.000000e+00 : f32
    %44 = vector.broadcast %cst_13 : f32 to vector<32x512xf32>
    %45 = arith.select %17, %42, %43 : vector<32x512xi1>, vector<32x512xf32>
    %cst_14 = arith.constant dense<0.000000e+00> : vector<512xf32>
    %46 = vector.multi_reduction <add>, %45, %cst_14 [0] : vector<32x512xf32> to vector<512xf32>
    %47 = vector.shape_cast %46 : vector<512xf32> to vector<1x512xf32>
    %48 = arith.select %18, %42, %43 : vector<32x512xi1>, vector<32x512xf32>
    %cst_15 = arith.constant dense<0.000000e+00> : vector<512xf32>
    %49 = vector.multi_reduction <add>, %48, %cst_15 [0] : vector<32x512xf32> to vector<512xf32>
    %50 = vector.shape_cast %49 : vector<512xf32> to vector<1x512xf32>
    %51 = arith.select %17, %44, %43 : vector<32x512xi1>, vector<32x512xf32>
    %cst_16 = arith.constant dense<0.000000e+00> : vector<512xf32>
    %52 = vector.multi_reduction <add>, %51, %cst_16 [0] : vector<32x512xf32> to vector<512xf32>
    %53 = vector.shape_cast %52 : vector<512xf32> to vector<1x512xf32>
    %54 = arith.select %18, %44, %43 : vector<32x512xi1>, vector<32x512xf32>
    %cst_17 = arith.constant dense<0.000000e+00> : vector<512xf32>
    %55 = vector.multi_reduction <add>, %54, %cst_17 [0] : vector<32x512xf32> to vector<512xf32>
    %56 = vector.shape_cast %55 : vector<512xf32> to vector<1x512xf32>
    %c0_18 = arith.constant 0 : index
    %c0_19 = arith.constant 0 : index
    %c0_20 = arith.constant 0 : index
    %57 = vector.load %arg4[%c0_18, %c0_19, %c0_20] : memref<1x4x512xf32, #tpu.memory_space<vmem>>, vector<1x1x512xf32>
    %58 = vector.shape_cast %57 : vector<1x1x512xf32> to vector<1x512xf32>
    %59 = vector.shape_cast %47 : vector<1x512xf32> to vector<1x1x512xf32>
    tpu.vector_store %arg4[%c0_18, %c0_19, %c0_20], %59 {strides = array<i32>} : memref<1x4x512xf32, #tpu.memory_space<vmem>>, vector<1x1x512xf32>,
    %c0_21 = arith.constant 0 : index
    %c1 = arith.constant 1 : index
    %c0_22 = arith.constant 0 : index
    %60 = vector.load %arg4[%c0_21, %c1, %c0_22] : memref<1x4x512xf32, #tpu.memory_space<vmem>>, vector<1x1x512xf32>
    %61 = vector.shape_cast %60 : vector<1x1x512xf32> to vector<1x512xf32>
    %62 = vector.shape_cast %50 : vector<1x512xf32> to vector<1x1x512xf32>
    tpu.vector_store %arg4[%c0_21, %c1, %c0_22], %62 {strides = array<i32>} : memref<1x4x512xf32, #tpu.memory_space<vmem>>, vector<1x1x512xf32>,
    %c0_23 = arith.constant 0 : index
    %c2 = arith.constant 2 : index
    %c0_24 = arith.constant 0 : index
    %63 = vector.load %arg4[%c0_23, %c2, %c0_24] : memref<1x4x512xf32, #tpu.memory_space<vmem>>, vector<1x1x512xf32>
    %64 = vector.shape_cast %63 : vector<1x1x512xf32> to vector<1x512xf32>
    %65 = vector.shape_cast %53 : vector<1x512xf32> to vector<1x1x512xf32>
    tpu.vector_store %arg4[%c0_23, %c2, %c0_24], %65 {strides = array<i32>} : memref<1x4x512xf32, #tpu.memory_space<vmem>>, vector<1x1x512xf32>,
    %c0_25 = arith.constant 0 : index
    %c3 = arith.constant 3 : index
    %c0_26 = arith.constant 0 : index
    %66 = vector.load %arg4[%c0_25, %c3, %c0_26] : memref<1x4x512xf32, #tpu.memory_space<vmem>>, vector<1x1x512xf32>
    %67 = vector.shape_cast %66 : vector<1x1x512xf32> to vector<1x512xf32>
    %68 = vector.shape_cast %56 : vector<1x512xf32> to vector<1x1x512xf32>
    tpu.vector_store %arg4[%c0_25, %c3, %c0_26], %68 {strides = array<i32>} : memref<1x4x512xf32, #tpu.memory_space<vmem>>, vector<1x1x512xf32>,
    return
  }
  func.func @transform_0(%arg0: i32) -> (i32, i32) {
    %c0_i32 = arith.constant 0 : i32
    %c0_i32_0 = arith.constant 0 : i32
    return %arg0, %c0_i32 : i32, i32
  }
  func.func @transform_1(%arg0: i32) -> (i32, i32) {
    %c0_i32 = arith.constant 0 : i32
    %c0_i32_0 = arith.constant 0 : i32
    return %arg0, %c0_i32 : i32, i32
  }
  func.func @transform_2(%arg0: i32) -> (i32, i32) {
    %c0_i32 = arith.constant 0 : i32
    %c0_i32_0 = arith.constant 0 : i32
    return %arg0, %c0_i32 : i32, i32
  }
  func.func @transform_3(%arg0: i32) -> (i32, i32, i32) {
    %c0_i32 = arith.constant 0 : i32
    %c0_i32_0 = arith.constant 0 : i32
    %c0_i32_1 = arith.constant 0 : i32
    return %arg0, %c0_i32, %c0_i32_0 : i32, i32, i32
  }
}

</mosaic_0001>

<llo_original>
// kernel: squeeze.7
$region0: #{squeeze.7}
  %s0 = inlined_call_operand.vmem [shape: f32[2,1,16,16], index: 0, kind: input, shape index: {}]
  %s1 = inlined_call_operand.vmem [shape: f32[512], index: 1, kind: output, shape index: {}]
  $region1: #{squeeze.7} parent=0
    #allocation0 [shape = 'u8[4096]{0}', space=vmem, size = 0x1000, scoped, tag = 'scoped mem for output reshape']
    %v2 = vld [vmem:[%s0] ss:$8 sm:$0xf]
    %vm3 = vcmask 130048
    %4 = vst.msk [vmem:[#allocation0] sm:$0xf] %vm3, %v2
    %s5 = scalar_lea.vmem %s0, 7
    %v6 = vld [vmem:[%s5] ss:$8 sm:$0xf]
    %7 = vrot.lane.b32.xlu0 %v6, 112
    %v8 = vpop.permute.xlu0 %7
    %vm9 = vcmask 1048448
    %10 = vst.msk [vmem:[#allocation0] sm:$0xf] %vm9, %v8
    %s11 = scalar_lea.vmem %s0, 6
    %v12 = vld [vmem:[%s11] ss:$8 sm:$0xf]
    %13 = vrot.lane.b32.xlu0 %v12, 96
    %v14 = vpop.permute.xlu0 %13
    %vm15 = vcmask 917248
    %16 = vst.msk [vmem:[#allocation0] sm:$0xf] %vm15, %v14
    %s17 = scalar_lea.vmem %s0, 5
    %v18 = vld [vmem:[%s17] ss:$8 sm:$0xf]
    %19 = vrot.lane.b32.xlu0 %v18, 80
    %v20 = vpop.permute.xlu0 %19
    %vm21 = vcmask 786048
    %22 = vst.msk [vmem:[#allocation0] sm:$0xf] %vm21, %v20
    %s23 = scalar_lea.vmem %s0, 4
    %v24 = vld [vmem:[%s23] ss:$8 sm:$0xf]
    %25 = vrot.lane.b32.xlu0 %v24, 64
    %v26 = vpop.permute.xlu0 %25
    %vm27 = vcmask 654848
    %28 = vst.msk [vmem:[#allocation0] sm:$0xf] %vm27, %v26
    %s29 = scalar_lea.vmem %s0, 3
    %v30 = vld [vmem:[%s29] ss:$8 sm:$0xf]
    %31 = vrot.lane.b32.xlu0 %v30, 48
    %v32 = vpop.permute.xlu0 %31
    %vm33 = vcmask 523648
    %34 = vst.msk [vmem:[#allocation0] sm:$0xf] %vm33, %v32
    %s35 = scalar_lea.vmem %s0, 2
    %v36 = vld [vmem:[%s35] ss:$8 sm:$0xf]
    %37 = vrot.lane.b32.xlu0 %v36, 32
    %v38 = vpop.permute.xlu0 %37
    %vm39 = vcmask 392448
    %40 = vst.msk [vmem:[#allocation0] sm:$0xf] %vm39, %v38
    %s41 = scalar_lea.vmem %s0, 1
    %v42 = vld [vmem:[%s41] ss:$8 sm:$0xf]
    %43 = vrot.lane.b32.xlu0 %v42, 16
    %v44 = vpop.permute.xlu0 %43
    %vm45 = vcmask 261248
    %46 = vst.msk [vmem:[#allocation0] sm:$0xf] %vm45, %v44
    %s48 = sshllo.u32 0, 4
    %v50 = vld [vmem:[#allocation0] sm:%s48]
    %s51 = sshllo.u32 0, 4
    %52 = vst [vmem:[%s1] sm:%s51] %v50

// kernel: binary_seesaw_loss.1
$region0: #{binary_seesaw_loss.1}
  #allocation0 [shape = 'u32[]', space=smem, size = 0x4, offset = 0x4, fixed_abs, tag = 'smem constant byte address 0x4 - core index']
  #allocation1 [shape = 'u32[144,128]{1,0:T(1,128)}', space=vmem, size = 0x12000, scoped, tag = 'internal scratch']
  %s0 = inlined_call_operand.vmem [shape: f32[32,512], index: 0, kind: input, shape index: {}]
  %s1 = inlined_call_operand.vmem [shape: f32[32,512], index: 1, kind: input, shape index: {}]
  %s2 = inlined_call_operand.vmem [shape: s32[32,512], index: 2, kind: input, shape index: {}]
  %s3 = inlined_call_operand.vmem [shape: f32[1,4,512], index: 3, kind: output, shape index: {}]
  %s4 = sld [smem:[#allocation0]]
  $region22: #{binary_seesaw_loss.1} parent=0
    _
  %s6 = ssub.s32 1, %s4
  %s7 = scalar_select 0, %s6, %s4
  // Predicated region
  $region2: #{binary_seesaw_loss.1} parent=0 // pred_check
    _
  $region3: #{binary_seesaw_loss.1} parent=0 // pred_check_branch
    %9 = sbr.rel (0) target = $region5
  $region4: #{binary_seesaw_loss.1} parent=0 // pred_region
    _
  $region5: #{binary_seesaw_loss.1} parent=0 // pred_fallthru
    _
  // Predicated region
  $region6: #{binary_seesaw_loss.1} parent=0 // pred_check
    _
  $region7: #{binary_seesaw_loss.1} parent=0 // pred_check_branch
    %11 = sbr.rel (0) target = $region9
  $region8: #{binary_seesaw_loss.1} parent=0 // pred_region
    _
  $region9: #{binary_seesaw_loss.1} parent=0 // pred_fallthru
    _
  // Predicated region
  $region10: #{binary_seesaw_loss.1} parent=0 // pred_check
    _
  $region11: #{binary_seesaw_loss.1} parent=0 // pred_check_branch
    %13 = sbr.rel (0) target = $region13
  $region12: #{binary_seesaw_loss.1} parent=0 // pred_region
    _
  $region13: #{binary_seesaw_loss.1} parent=0 // pred_fallthru
    _
  %v14 = vld [vmem:[%s0] sm:$0xff]
  %v15 = vld [vmem:[%s0 + $0x8] sm:$0xff]
  %v16 = vld [vmem:[%s0 + $0x10] sm:$0xff]
  %v17 = vld [vmem:[%s0 + $0x18] sm:$0xff]
  %v18 = vld [vmem:[%s0 + $0x20] sm:$0xff]
  %v19 = vld [vmem:[%s0 + $0x28] sm:$0xff]
  %v20 = vld [vmem:[%s0 + $0x30] sm:$0xff]
  %v21 = vld [vmem:[%s0 + $0x38] sm:$0xff]
  %v22 = vld [vmem:[%s0 + $0x40] sm:$0xff]
  %v23 = vld [vmem:[%s0 + $0x48] sm:$0xff]
  %v24 = vld [vmem:[%s0 + $0x50] sm:$0xff]
  %v25 = vld [vmem:[%s0 + $0x58] sm:$0xff]
  %v26 = vld [vmem:[%s0 + $0x60] sm:$0xff]
  %v27 = vld [vmem:[%s0 + $0x68] sm:$0xff]
  %v28 = vld [vmem:[%s0 + $0x70] sm:$0xff]
  %v29 = vld [vmem:[%s0 + $0x78] sm:$0xff]
  %v30 = vld [vmem:[%s1] sm:$0xff]
  %v31 = vld [vmem:[%s1 + $0x8] sm:$0xff]
  %v32 = vld [vmem:[%s1 + $0x10] sm:$0xff]
  %v33 = vld [vmem:[%s1 + $0x18] sm:$0xff]
  %v34 = vld [vmem:[%s1 + $0x20] sm:$0xff]
  %v35 = vld [vmem:[%s1 + $0x28] sm:$0xff]
  %v36 = vld [vmem:[%s1 + $0x30] sm:$0xff]
  %v37 = vld [vmem:[%s1 + $0x38] sm:$0xff]
  %v38 = vld [vmem:[%s1 + $0x40] sm:$0xff]
  %v39 = vld [vmem:[%s1 + $0x48] sm:$0xff]
  %v40 = vld [vmem:[%s1 + $0x50] sm:$0xff]
  %v41 = vld [vmem:[%s1 + $0x58] sm:$0xff]
  %v42 = vld [vmem:[%s1 + $0x60] sm:$0xff]
  %v43 = vld [vmem:[%s1 + $0x68] sm:$0xff]
  %v44 = vld [vmem:[%s1 + $0x70] sm:$0xff]
  %v45 = vld [vmem:[%s1 + $0x78] sm:$0xff]
  %v46 = vld [vmem:[%s2] sm:$0xff]
  %v47 = vld [vmem:[%s2 + $0x8] sm:$0xff]
  %v48 = vld [vmem:[%s2 + $0x10] sm:$0xff]
  %v49 = vld [vmem:[%s2 + $0x18] sm:$0xff]
  %v50 = vld [vmem:[%s2 + $0x20] sm:$0xff]
  %v51 = vld [vmem:[%s2 + $0x28] sm:$0xff]
  %v52 = vld [vmem:[%s2 + $0x30] sm:$0xff]
  %v53 = vld [vmem:[%s2 + $0x38] sm:$0xff]
  %v54 = vld [vmem:[%s2 + $0x40] sm:$0xff]
  %v55 = vld [vmem:[%s2 + $0x48] sm:$0xff]
  %v56 = vld [vmem:[%s2 + $0x50] sm:$0xff]
  %v57 = vld [vmem:[%s2 + $0x58] sm:$0xff]
  %v58 = vld [vmem:[%s2 + $0x60] sm:$0xff]
  %v59 = vld [vmem:[%s2 + $0x68] sm:$0xff]
  %v60 = vld [vmem:[%s2 + $0x70] sm:$0xff]
  %v61 = vld [vmem:[%s2 + $0x78] sm:$0xff]
  %v62 = vlaneseq
  %v63 = vshrl.u32 %v62, 7
  %v64 = vadd.s32 %v63, 8
  %v65 = vadd.s32 %v63, 16
  %v66 = vadd.s32 %v63, 24
  %v67 = vlaneseq
  %v68 = vand.u32 %v67, 127
  %v69 = vadd.s32 %v68, 128
  %v70 = vadd.s32 %v68, 256
  %v71 = vadd.s32 %v68, 384
  %s72 = smul.u32 0, 32
  %v73 = vstv %s72
  %v74 = vadd.s32 %v73, %v63
  %v75 = vadd.s32 %v73, %v64
  %v76 = vadd.s32 %v73, %v65
  %v77 = vadd.s32 %v73, %v66
  %v78 = vmul.u32 %v74, 512
  %v79 = vmul.u32 %v75, 512
  %v80 = vmul.u32 %v76, 512
  %v81 = vmul.u32 %v77, 512
  %v82 = vadd.s32 %v78, %v68
  %v83 = vadd.s32 %v78, %v69
  %v84 = vadd.s32 %v78, %v70
  %v85 = vadd.s32 %v78, %v71
  %v86 = vadd.s32 %v79, %v68
  %v87 = vadd.s32 %v79, %v69
  %v88 = vadd.s32 %v79, %v70
  %v89 = vadd.s32 %v79, %v71
  %v90 = vadd.s32 %v80, %v68
  %v91 = vadd.s32 %v80, %v69
  %v92 = vadd.s32 %v80, %v70
  %v93 = vadd.s32 %v80, %v71
  %v94 = vadd.s32 %v81, %v68
  %v95 = vadd.s32 %v81, %v69
  %v96 = vadd.s32 %v81, %v70
  %v97 = vadd.s32 %v81, %v71
  %vm98 = vcmp.lt.s32.totalorder %v82, 512
  %vm99 = vcmp.lt.s32.totalorder %v83, 512
  %vm100 = vcmp.lt.s32.totalorder %v84, 512
  %vm101 = vcmp.lt.s32.totalorder %v85, 512
  %vm102 = vcmp.lt.s32.totalorder %v86, 512
  %vm103 = vcmp.lt.s32.totalorder %v87, 512
  %vm104 = vcmp.lt.s32.totalorder %v88, 512
  %vm105 = vcmp.lt.s32.totalorder %v89, 512
  %vm106 = vcmp.lt.s32.totalorder %v90, 512
  %vm107 = vcmp.lt.s32.totalorder %v91, 512
  %vm108 = vcmp.lt.s32.totalorder %v92, 512
  %vm109 = vcmp.lt.s32.totalorder %v93, 512
  %vm110 = vcmp.lt.s32.totalorder %v94, 512
  %vm111 = vcmp.lt.s32.totalorder %v95, 512
  %vm112 = vcmp.lt.s32.totalorder %v96, 512
  %vm113 = vcmp.lt.s32.totalorder %v97, 512
  %vm114 = vcmp.eq.s32.totalorder %v46, 1
  %vm115 = vcmp.eq.s32.totalorder %v47, 1
  %vm116 = vcmp.eq.s32.totalorder %v48, 1
  %vm117 = vcmp.eq.s32.totalorder %v49, 1
  %vm118 = vcmp.eq.s32.totalorder %v50, 1
  %vm119 = vcmp.eq.s32.totalorder %v51, 1
  %vm120 = vcmp.eq.s32.totalorder %v52, 1
  %vm121 = vcmp.eq.s32.totalorder %v53, 1
  %vm122 = vcmp.eq.s32.totalorder %v54, 1
  %vm123 = vcmp.eq.s32.totalorder %v55, 1
  %vm124 = vcmp.eq.s32.totalorder %v56, 1
  %vm125 = vcmp.eq.s32.totalorder %v57, 1
  %vm126 = vcmp.eq.s32.totalorder %v58, 1
  %vm127 = vcmp.eq.s32.totalorder %v59, 1
  %vm128 = vcmp.eq.s32.totalorder %v60, 1
  %vm129 = vcmp.eq.s32.totalorder %v61, 1
  %vm130 = vcmp.eq.s32.totalorder %v46, 0
  %vm131 = vcmp.eq.s32.totalorder %v47, 0
  %vm132 = vcmp.eq.s32.totalorder %v48, 0
  %vm133 = vcmp.eq.s32.totalorder %v49, 0
  %vm134 = vcmp.eq.s32.totalorder %v50, 0
  %vm135 = vcmp.eq.s32.totalorder %v51, 0
  %vm136 = vcmp.eq.s32.totalorder %v52, 0
  %vm137 = vcmp.eq.s32.totalorder %v53, 0
  %vm138 = vcmp.eq.s32.totalorder %v54, 0
  %vm139 = vcmp.eq.s32.totalorder %v55, 0
  %vm140 = vcmp.eq.s32.totalorder %v56, 0
  %vm141 = vcmp.eq.s32.totalorder %v57, 0
  %vm142 = vcmp.eq.s32.totalorder %v58, 0
  %vm143 = vcmp.eq.s32.totalorder %v59, 0
  %vm144 = vcmp.eq.s32.totalorder %v60, 0
  %vm145 = vcmp.eq.s32.totalorder %v61, 0
  %vm146 = vmand %vm114, %vm98
  %vm147 = vmand %vm115, %vm99
  %vm148 = vmand %vm116, %vm100
  %vm149 = vmand %vm117, %vm101
  %vm150 = vmand %vm118, %vm102
  %vm151 = vmand %vm119, %vm103
  %vm152 = vmand %vm120, %vm104
  %vm153 = vmand %vm121, %vm105
  %vm154 = vmand %vm122, %vm106
  %vm155 = vmand %vm123, %vm107
  %vm156 = vmand %vm124, %vm108
  %vm157 = vmand %vm125, %vm109
  %vm158 = vmand %vm126, %vm110
  %vm159 = vmand %vm127, %vm111
  %vm160 = vmand %vm128, %vm112
  %vm161 = vmand %vm129, %vm113
  %vm162 = vmand %vm130, %vm98
  %vm163 = vmand %vm131, %vm99
  %vm164 = vmand %vm132, %vm100
  %vm165 = vmand %vm133, %vm101
  %vm166 = vmand %vm134, %vm102
  %vm167 = vmand %vm135, %vm103
  %vm168 = vmand %vm136, %vm104
  %vm169 = vmand %vm137, %vm105
  %vm170 = vmand %vm138, %vm106
  %vm171 = vmand %vm139, %vm107
  %vm172 = vmand %vm140, %vm108
  %vm173 = vmand %vm141, %vm109
  %vm174 = vmand %vm142, %vm110
  %vm175 = vmand %vm143, %vm111
  %vm176 = vmand %vm144, %vm112
  %vm177 = vmand %vm145, %vm113
  %v178 = vmul.f32 %v14, 1.442695
  %v179 = vpow.pop %v178
  %v180 = vmul.f32 %v15, 1.442695
  %v181 = vpow.pop %v180
  %v182 = vmul.f32 %v16, 1.442695
  %v183 = vpow.pop %v182
  %v184 = vmul.f32 %v17, 1.442695
  %v185 = vpow.pop %v184
  %v186 = vmul.f32 %v18, 1.442695
  %v187 = vpow.pop %v186
  %v188 = vmul.f32 %v19, 1.442695
  %v189 = vpow.pop %v188
  %v190 = vmul.f32 %v20, 1.442695
  %v191 = vpow.pop %v190
  %v192 = vmul.f32 %v21, 1.442695
  %v193 = vpow.pop %v192
  %v194 = vmul.f32 %v22, 1.442695
  %v195 = vpow.pop %v194
  %v196 = vmul.f32 %v23, 1.442695
  %v197 = vpow.pop %v196
  %v198 = vmul.f32 %v24, 1.442695
  %v199 = vpow.pop %v198
  %v200 = vmul.f32 %v25, 1.442695
  %v201 = vpow.pop %v200
  %v202 = vmul.f32 %v26, 1.442695
  %v203 = vpow.pop %v202
  %v204 = vmul.f32 %v27, 1.442695
  %v205 = vpow.pop %v204
  %v206 = vmul.f32 %v28, 1.442695
  %v207 = vpow.pop %v206
  %v208 = vmul.f32 %v29, 1.442695
  %v209 = vpow.pop %v208
  %v210 = vmul.f32 %v30, 1.442695
  %v211 = vpow.pop %v210
  %v212 = vmul.f32 %v31, 1.442695
  %v213 = vpow.pop %v212
  %v214 = vmul.f32 %v32, 1.442695
  %v215 = vpow.pop %v214
  %v216 = vmul.f32 %v33, 1.442695
  %v217 = vpow.pop %v216
  %v218 = vmul.f32 %v34, 1.442695
  %v219 = vpow.pop %v218
  %v220 = vmul.f32 %v35, 1.442695
  %v221 = vpow.pop %v220
  %v222 = vmul.f32 %v36, 1.442695
  %v223 = vpow.pop %v222
  %v224 = vmul.f32 %v37, 1.442695
  %v225 = vpow.pop %v224
  %v226 = vmul.f32 %v38, 1.442695
  %v227 = vpow.pop %v226
  %v228 = vmul.f32 %v39, 1.442695
  %v229 = vpow.pop %v228
  %v230 = vmul.f32 %v40, 1.442695
  %v231 = vpow.pop %v230
  %v232 = vmul.f32 %v41, 1.442695
  %v233 = vpow.pop %v232
  %v234 = vmul.f32 %v42, 1.442695
  %v235 = vpow.pop %v234
  %v236 = vmul.f32 %v43, 1.442695
  %v237 = vpow.pop %v236
  %v238 = vmul.f32 %v44, 1.442695
  %v239 = vpow.pop %v238
  %v240 = vmul.f32 %v45, 1.442695
  %v241 = vpow.pop %v240
  %v242 = vadd.f32 %v179, %v211
  %v243 = vadd.f32 %v181, %v213
  %v244 = vadd.f32 %v183, %v215
  %v245 = vadd.f32 %v185, %v217
  %v246 = vadd.f32 %v187, %v219
  %v247 = vadd.f32 %v189, %v221
  %v248 = vadd.f32 %v191, %v223
  %v249 = vadd.f32 %v193, %v225
  %v250 = vadd.f32 %v195, %v227
  %v251 = vadd.f32 %v197, %v229
  %v252 = vadd.f32 %v199, %v231
  %v253 = vadd.f32 %v201, %v233
  %v254 = vadd.f32 %v203, %v235
  %v255 = vadd.f32 %v205, %v237
  %v256 = vadd.f32 %v207, %v239
  %v257 = vadd.f32 %v209, %v241
  %v258 = vadd.f32 %v242, 1e-06
  %v259 = vadd.f32 %v243, 1e-06
  %v260 = vadd.f32 %v244, 1e-06
  %v261 = vadd.f32 %v245, 1e-06
  %v262 = vadd.f32 %v246, 1e-06
  %v263 = vadd.f32 %v247, 1e-06
  %v264 = vadd.f32 %v248, 1e-06
  %v265 = vadd.f32 %v249, 1e-06
  %v266 = vadd.f32 %v250, 1e-06
  %v267 = vadd.f32 %v251, 1e-06
  %v268 = vadd.f32 %v252, 1e-06
  %v269 = vadd.f32 %v253, 1e-06
  %v270 = vadd.f32 %v254, 1e-06
  %v271 = vadd.f32 %v255, 1e-06
  %v272 = vadd.f32 %v256, 1e-06
  %v273 = vadd.f32 %v257, 1e-06
  %v274 = vlog2.pop %v258
  %v275 = vmul.f32 %v274, 0.6931472
  %v276 = vlog2.pop %v259
  %v277 = vmul.f32 %v276, 0.6931472
  %v278 = vlog2.pop %v260
  %v279 = vmul.f32 %v278, 0.6931472
  %v280 = vlog2.pop %v261
  %v281 = vmul.f32 %v280, 0.6931472
  %v282 = vlog2.pop %v262
  %v283 = vmul.f32 %v282, 0.6931472
  %v284 = vlog2.pop %v263
  %v285 = vmul.f32 %v284, 0.6931472
  %v286 = vlog2.pop %v264
  %v287 = vmul.f32 %v286, 0.6931472
  %v288 = vlog2.pop %v265
  %v289 = vmul.f32 %v288, 0.6931472
  %v290 = vlog2.pop %v266
  %v291 = vmul.f32 %v290, 0.6931472
  %v292 = vlog2.pop %v267
  %v293 = vmul.f32 %v292, 0.6931472
  %v294 = vlog2.pop %v268
  %v295 = vmul.f32 %v294, 0.6931472
  %v296 = vlog2.pop %v269
  %v297 = vmul.f32 %v296, 0.6931472
  %v298 = vlog2.pop %v270
  %v299 = vmul.f32 %v298, 0.6931472
  %v300 = vlog2.pop %v271
  %v301 = vmul.f32 %v300, 0.6931472
  %v302 = vlog2.pop %v272
  %v303 = vmul.f32 %v302, 0.6931472
  %v304 = vlog2.pop %v273
  %v305 = vmul.f32 %v304, 0.6931472
  %v306 = vsel %vm146, %v30, %v14
  %v307 = vsel %vm147, %v31, %v15
  %v308 = vsel %vm148, %v32, %v16
  %v309 = vsel %vm149, %v33, %v17
  %v310 = vsel %vm150, %v34, %v18
  %v311 = vsel %vm151, %v35, %v19
  %v312 = vsel %vm152, %v36, %v20
  %v313 = vsel %vm153, %v37, %v21
  %v314 = vsel %vm154, %v38, %v22
  %v315 = vsel %vm155, %v39, %v23
  %v316 = vsel %vm156, %v40, %v24
  %v317 = vsel %vm157, %v41, %v25
  %v318 = vsel %vm158, %v42, %v26
  %v319 = vsel %vm159, %v43, %v27
  %v320 = vsel %vm160, %v44, %v28
  %v321 = vsel %vm161, %v45, %v29
  %v322 = vsub.f32 %v14, %v30
  %v323 = vsub.f32 %v15, %v31
  %v324 = vsub.f32 %v16, %v32
  %v325 = vsub.f32 %v17, %v33
  %v326 = vsub.f32 %v18, %v34
  %v327 = vsub.f32 %v19, %v35
  %v328 = vsub.f32 %v20, %v36
  %v329 = vsub.f32 %v21, %v37
  %v330 = vsub.f32 %v22, %v38
  %v331 = vsub.f32 %v23, %v39
  %v332 = vsub.f32 %v24, %v40
  %v333 = vsub.f32 %v25, %v41
  %v334 = vsub.f32 %v26, %v42
  %v335 = vsub.f32 %v27, %v43
  %v336 = vsub.f32 %v28, %v44
  %v337 = vsub.f32 %v29, %v45
  %v338 = vsub.f32 0.0, %v322
  %v339 = vsub.f32 0.0, %v323
  %v340 = vsub.f32 0.0, %v324
  %v341 = vsub.f32 0.0, %v325
  %v342 = vsub.f32 0.0, %v326
  %v343 = vsub.f32 0.0, %v327
  %v344 = vsub.f32 0.0, %v328
  %v345 = vsub.f32 0.0, %v329
  %v346 = vsub.f32 0.0, %v330
  %v347 = vsub.f32 0.0, %v331
  %v348 = vsub.f32 0.0, %v332
  %v349 = vsub.f32 0.0, %v333
  %v350 = vsub.f32 0.0, %v334
  %v351 = vsub.f32 0.0, %v335
  %v352 = vsub.f32 0.0, %v336
  %v353 = vsub.f32 0.0, %v337
  %v354 = vsel %vm146, %v322, %v338
  %v355 = vsel %vm147, %v323, %v339
  %v356 = vsel %vm148, %v324, %v340
  %v357 = vsel %vm149, %v325, %v341
  %v358 = vsel %vm150, %v326, %v342
  %v359 = vsel %vm151, %v327, %v343
  %v360 = vsel %vm152, %v328, %v344
  %v361 = vsel %vm153, %v329, %v345
  %v362 = vsel %vm154, %v330, %v346
  %v363 = vsel %vm155, %v331, %v347
  %v364 = vsel %vm156, %v332, %v348
  %v365 = vsel %vm157, %v333, %v349
  %v366 = vsel %vm158, %v334, %v350
  %v367 = vsel %vm159, %v335, %v351
  %v368 = vsel %vm160, %v336, %v352
  %v369 = vsel %vm161, %v337, %v353
  %v370 = vmul.f32 %v354, 2.0
  %v371 = vmul.f32 %v355, 2.0
  %v372 = vmul.f32 %v356, 2.0
  %v373 = vmul.f32 %v357, 2.0
  %v374 = vmul.f32 %v358, 2.0
  %v375 = vmul.f32 %v359, 2.0
  %v376 = vmul.f32 %v360, 2.0
  %v377 = vmul.f32 %v361, 2.0
  %v378 = vmul.f32 %v362, 2.0
  %v379 = vmul.f32 %v363, 2.0
  %v380 = vmul.f32 %v364, 2.0
  %v381 = vmul.f32 %v365, 2.0
  %v382 = vmul.f32 %v366, 2.0
  %v383 = vmul.f32 %v367, 2.0
  %v384 = vmul.f32 %v368, 2.0
  %v385 = vmul.f32 %v369, 2.0
  %v386 = vmul.f32 %v370, 1.442695
  %v387 = vpow.pop %v386
  %v388 = vmul.f32 %v371, 1.442695
  %v389 = vpow.pop %v388
  %v390 = vmul.f32 %v372, 1.442695
  %v391 = vpow.pop %v390
  %v392 = vmul.f32 %v373, 1.442695
  %v393 = vpow.pop %v392
  %v394 = vmul.f32 %v374, 1.442695
  %v395 = vpow.pop %v394
  %v396 = vmul.f32 %v375, 1.442695
  %v397 = vpow.pop %v396
  %v398 = vmul.f32 %v376, 1.442695
  %v399 = vpow.pop %v398
  %v400 = vmul.f32 %v377, 1.442695
  %v401 = vpow.pop %v400
  %v402 = vmul.f32 %v378, 1.442695
  %v403 = vpow.pop %v402
  %v404 = vmul.f32 %v379, 1.442695
  %v405 = vpow.pop %v404
  %v406 = vmul.f32 %v380, 1.442695
  %v407 = vpow.pop %v406
  %v408 = vmul.f32 %v381, 1.442695
  %v409 = vpow.pop %v408
  %v410 = vmul.f32 %v382, 1.442695
  %v411 = vpow.pop %v410
  %v412 = vmul.f32 %v383, 1.442695
  %v413 = vpow.pop %v412
  %v414 = vmul.f32 %v384, 1.442695
  %v415 = vpow.pop %v414
  %v416 = vmul.f32 %v385, 1.442695
  %v417 = vpow.pop %v416
  %v418 = vmax.f32 %v387, 1.0
  %v419 = vmax.f32 %v389, 1.0
  %v420 = vmax.f32 %v391, 1.0
  %v421 = vmax.f32 %v393, 1.0
  %v422 = vmax.f32 %v395, 1.0
  %v423 = vmax.f32 %v397, 1.0
  %v424 = vmax.f32 %v399, 1.0
  %v425 = vmax.f32 %v401, 1.0
  %v426 = vmax.f32 %v403, 1.0
  %v427 = vmax.f32 %v405, 1.0
  %v428 = vmax.f32 %v407, 1.0
  %v429 = vmax.f32 %v409, 1.0
  %v430 = vmax.f32 %v411, 1.0
  %v431 = vmax.f32 %v413, 1.0
  %v432 = vmax.f32 %v415, 1.0
  %v433 = vmax.f32 %v417, 1.0
  %v434 = vmin.f32 %v418, 5.0
  %v435 = vmin.f32 %v419, 5.0
  %v436 = vmin.f32 %v420, 5.0
  %v437 = vmin.f32 %v421, 5.0
  %v438 = vmin.f32 %v422, 5.0
  %v439 = vmin.f32 %v423, 5.0
  %v440 = vmin.f32 %v424, 5.0
  %v441 = vmin.f32 %v425, 5.0
  %v442 = vmin.f32 %v426, 5.0
  %v443 = vmin.f32 %v427, 5.0
  %v444 = vmin.f32 %v428, 5.0
  %v445 = vmin.f32 %v429, 5.0
  %v446 = vmin.f32 %v430, 5.0
  %v447 = vmin.f32 %v431, 5.0
  %v448 = vmin.f32 %v432, 5.0
  %v449 = vmin.f32 %v433, 5.0
  %v450 = vsub.f32 %v275, %v306
  %v451 = vsub.f32 %v277, %v307
  %v452 = vsub.f32 %v279, %v308
  %v453 = vsub.f32 %v281, %v309
  %v454 = vsub.f32 %v283, %v310
  %v455 = vsub.f32 %v285, %v311
  %v456 = vsub.f32 %v287, %v312
  %v457 = vsub.f32 %v289, %v313
  %v458 = vsub.f32 %v291, %v314
  %v459 = vsub.f32 %v293, %v315
  %v460 = vsub.f32 %v295, %v316
  %v461 = vsub.f32 %v297, %v317
  %v462 = vsub.f32 %v299, %v318
  %v463 = vsub.f32 %v301, %v319
  %v464 = vsub.f32 %v303, %v320
  %v465 = vsub.f32 %v305, %v321
  %v466 = vmul.f32 %v450, %v434
  %v467 = vmul.f32 %v451, %v435
  %v468 = vmul.f32 %v452, %v436
  %v469 = vmul.f32 %v453, %v437
  %v470 = vmul.f32 %v454, %v438
  %v471 = vmul.f32 %v455, %v439
  %v472 = vmul.f32 %v456, %v440
  %v473 = vmul.f32 %v457, %v441
  %v474 = vmul.f32 %v458, %v442
  %v475 = vmul.f32 %v459, %v443
  %v476 = vmul.f32 %v460, %v444
  %v477 = vmul.f32 %v461, %v445
  %v478 = vmul.f32 %v462, %v446
  %v479 = vmul.f32 %v463, %v447
  %v480 = vmul.f32 %v464, %v448
  %v481 = vmul.f32 %v465, %v449
  %v482 = vsel %vm146, %v466, 0.0
  %v483 = vsel %vm147, %v467, 0.0
  %v484 = vsel %vm148, %v468, 0.0
  %v485 = vsel %vm149, %v469, 0.0
  %v486 = vsel %vm150, %v470, 0.0
  %v487 = vsel %vm151, %v471, 0.0
  %v488 = vsel %vm152, %v472, 0.0
  %v489 = vsel %vm153, %v473, 0.0
  %v490 = vsel %vm154, %v474, 0.0
  %v491 = vsel %vm155, %v475, 0.0
  %v492 = vsel %vm156, %v476, 0.0
  %v493 = vsel %vm157, %v477, 0.0
  %v494 = vsel %vm158, %v478, 0.0
  %v495 = vsel %vm159, %v479, 0.0
  %v496 = vsel %vm160, %v480, 0.0
  %v497 = vsel %vm161, %v481, 0.0
  %v498 = vadd.f32 %v482, %v486
  %v499 = vadd.f32 %v498, %v490
  %v500 = vadd.f32 %v499, %v494
  %v501 = vrot.slane %v500, 4
  %v502 = vadd.f32 %v500, %v501
  %v503 = vrot.slane %v502, 2
  %v504 = vadd.f32 %v502, %v503
  %v505 = vrot.slane %v504, 1
  %v506 = vadd.f32 %v504, %v505
  %v507 = vadd.f32 %v483, %v487
  %v508 = vadd.f32 %v507, %v491
  %v509 = vadd.f32 %v508, %v495
  %v510 = vrot.slane %v509, 4
  %v511 = vadd.f32 %v509, %v510
  %v512 = vrot.slane %v511, 2
  %v513 = vadd.f32 %v511, %v512
  %v514 = vrot.slane %v513, 1
  %v515 = vadd.f32 %v513, %v514
  %v516 = vadd.f32 %v484, %v488
  %v517 = vadd.f32 %v516, %v492
  %v518 = vadd.f32 %v517, %v496
  %v519 = vrot.slane %v518, 4
  %v520 = vadd.f32 %v518, %v519
  %v521 = vrot.slane %v520, 2
  %v522 = vadd.f32 %v520, %v521
  %v523 = vrot.slane %v522, 1
  %v524 = vadd.f32 %v522, %v523
  %v525 = vadd.f32 %v485, %v489
  %v526 = vadd.f32 %v525, %v493
  %v527 = vadd.f32 %v526, %v497
  %v528 = vrot.slane %v527, 4
  %v529 = vadd.f32 %v527, %v528
  %v530 = vrot.slane %v529, 2
  %v531 = vadd.f32 %v529, %v530
  %v532 = vrot.slane %v531, 1
  %v533 = vadd.f32 %v531, %v532
  %v534 = vsel %vm162, %v466, 0.0
  %v535 = vsel %vm163, %v467, 0.0
  %v536 = vsel %vm164, %v468, 0.0
  %v537 = vsel %vm165, %v469, 0.0
  %v538 = vsel %vm166, %v470, 0.0
  %v539 = vsel %vm167, %v471, 0.0
  %v540 = vsel %vm168, %v472, 0.0
  %v541 = vsel %vm169, %v473, 0.0
  %v542 = vsel %vm170, %v474, 0.0
  %v543 = vsel %vm171, %v475, 0.0
  %v544 = vsel %vm172, %v476, 0.0
  %v545 = vsel %vm173, %v477, 0.0
  %v546 = vsel %vm174, %v478, 0.0
  %v547 = vsel %vm175, %v479, 0.0
  %v548 = vsel %vm176, %v480, 0.0
  %v549 = vsel %vm177, %v481, 0.0
  %v550 = vadd.f32 %v534, %v538
  %v551 = vadd.f32 %v550, %v542
  %v552 = vadd.f32 %v551, %v546
  %v553 = vrot.slane %v552, 4
  %v554 = vadd.f32 %v552, %v553
  %v555 = vrot.slane %v554, 2
  %v556 = vadd.f32 %v554, %v555
  %v557 = vrot.slane %v556, 1
  %v558 = vadd.f32 %v556, %v557
  %v559 = vadd.f32 %v535, %v539
  %v560 = vadd.f32 %v559, %v543
  %v561 = vadd.f32 %v560, %v547
  %v562 = vrot.slane %v561, 4
  %v563 = vadd.f32 %v561, %v562
  %v564 = vrot.slane %v563, 2
  %v565 = vadd.f32 %v563, %v564
  %v566 = vrot.slane %v565, 1
  %v567 = vadd.f32 %v565, %v566
  %v568 = vadd.f32 %v536, %v540
  %v569 = vadd.f32 %v568, %v544
  %v570 = vadd.f32 %v569, %v548
  %v571 = vrot.slane %v570, 4
  %v572 = vadd.f32 %v570, %v571
  %v573 = vrot.slane %v572, 2
  %v574 = vadd.f32 %v572, %v573
  %v575 = vrot.slane %v574, 1
  %v576 = vadd.f32 %v574, %v575
  %v577 = vadd.f32 %v537, %v541
  %v578 = vadd.f32 %v577, %v545
  %v579 = vadd.f32 %v578, %v549
  %v580 = vrot.slane %v579, 4
  %v581 = vadd.f32 %v579, %v580
  %v582 = vrot.slane %v581, 2
  %v583 = vadd.f32 %v581, %v582
  %v584 = vrot.slane %v583, 1
  %v585 = vadd.f32 %v583, %v584
  %v586 = vsel %vm146, 1.0, 0.0
  %v587 = vsel %vm147, 1.0, 0.0
  %v588 = vsel %vm148, 1.0, 0.0
  %v589 = vsel %vm149, 1.0, 0.0
  %v590 = vsel %vm150, 1.0, 0.0
  %v591 = vsel %vm151, 1.0, 0.0
  %v592 = vsel %vm152, 1.0, 0.0
  %v593 = vsel %vm153, 1.0, 0.0
  %v594 = vsel %vm154, 1.0, 0.0
  %v595 = vsel %vm155, 1.0, 0.0
  %v596 = vsel %vm156, 1.0, 0.0
  %v597 = vsel %vm157, 1.0, 0.0
  %v598 = vsel %vm158, 1.0, 0.0
  %v599 = vsel %vm159, 1.0, 0.0
  %v600 = vsel %vm160, 1.0, 0.0
  %v601 = vsel %vm161, 1.0, 0.0
  %v602 = vadd.f32 %v586, %v590
  %v603 = vadd.f32 %v602, %v594
  %v604 = vadd.f32 %v603, %v598
  %v605 = vrot.slane %v604, 4
  %v606 = vadd.f32 %v604, %v605
  %v607 = vrot.slane %v606, 2
  %v608 = vadd.f32 %v606, %v607
  %v609 = vrot.slane %v608, 1
  %v610 = vadd.f32 %v608, %v609
  %v611 = vadd.f32 %v587, %v591
  %v612 = vadd.f32 %v611, %v595
  %v613 = vadd.f32 %v612, %v599
  %v614 = vrot.slane %v613, 4
  %v615 = vadd.f32 %v613, %v614
  %v616 = vrot.slane %v615, 2
  %v617 = vadd.f32 %v615, %v616
  %v618 = vrot.slane %v617, 1
  %v619 = vadd.f32 %v617, %v618
  %v620 = vadd.f32 %v588, %v592
  %v621 = vadd.f32 %v620, %v596
  %v622 = vadd.f32 %v621, %v600
  %v623 = vrot.slane %v622, 4
  %v624 = vadd.f32 %v622, %v623
  %v625 = vrot.slane %v624, 2
  %v626 = vadd.f32 %v624, %v625
  %v627 = vrot.slane %v626, 1
  %v628 = vadd.f32 %v626, %v627
  %v629 = vadd.f32 %v589, %v593
  %v630 = vadd.f32 %v629, %v597
  %v631 = vadd.f32 %v630, %v601
  %v632 = vrot.slane %v631, 4
  %v633 = vadd.f32 %v631, %v632
  %v634 = vrot.slane %v633, 2
  %v635 = vadd.f32 %v633, %v634
  %v636 = vrot.slane %v635, 1
  %v637 = vadd.f32 %v635, %v636
  %v638 = vsel %vm162, 1.0, 0.0
  %v639 = vsel %vm163, 1.0, 0.0
  %v640 = vsel %vm164, 1.0, 0.0
  %v641 = vsel %vm165, 1.0, 0.0
  %v642 = vsel %vm166, 1.0, 0.0
  %v643 = vsel %vm167, 1.0, 0.0
  %v644 = vsel %vm168, 1.0, 0.0
  %v645 = vsel %vm169, 1.0, 0.0
  %v646 = vsel %vm170, 1.0, 0.0
  %v647 = vsel %vm171, 1.0, 0.0
  %v648 = vsel %vm172, 1.0, 0.0
  %v649 = vsel %vm173, 1.0, 0.0
  %v650 = vsel %vm174, 1.0, 0.0
  %v651 = vsel %vm175, 1.0, 0.0
  %v652 = vsel %vm176, 1.0, 0.0
  %v653 = vsel %vm177, 1.0, 0.0
  %v654 = vadd.f32 %v638, %v642
  %v655 = vadd.f32 %v654, %v646
  %v656 = vadd.f32 %v655, %v650
  %v657 = vrot.slane %v656, 4
  %v658 = vadd.f32 %v656, %v657
  %v659 = vrot.slane %v658, 2
  %v660 = vadd.f32 %v658, %v659
  %v661 = vrot.slane %v660, 1
  %v662 = vadd.f32 %v660, %v661
  %v663 = vadd.f32 %v639, %v643
  %v664 = vadd.f32 %v663, %v647
  %v665 = vadd.f32 %v664, %v651
  %v666 = vrot.slane %v665, 4
  %v667 = vadd.f32 %v665, %v666
  %v668 = vrot.slane %v667, 2
  %v669 = vadd.f32 %v667, %v668
  %v670 = vrot.slane %v669, 1
  %v671 = vadd.f32 %v669, %v670
  %v672 = vadd.f32 %v640, %v644
  %v673 = vadd.f32 %v672, %v648
  %v674 = vadd.f32 %v673, %v652
  %v675 = vrot.slane %v674, 4
  %v676 = vadd.f32 %v674, %v675
  %v677 = vrot.slane %v676, 2
  %v678 = vadd.f32 %v676, %v677
  %v679 = vrot.slane %v678, 1
  %v680 = vadd.f32 %v678, %v679
  %v681 = vadd.f32 %v641, %v645
  %v682 = vadd.f32 %v681, %v649
  %v683 = vadd.f32 %v682, %v653
  %v684 = vrot.slane %v683, 4
  %v685 = vadd.f32 %v683, %v684
  %v686 = vrot.slane %v685, 2
  %v687 = vadd.f32 %v685, %v686
  %v688 = vrot.slane %v687, 1
  %v689 = vadd.f32 %v687, %v688
  %v694 = vcombine.low %v506, %v515
  %v695 = vcombine.low %v524, %v533
  %v697 = vunpack.c.l.s4 1966171168
  %v698 = vunpack.c.0.s8 %v697
  %v699 = vlaneseq
  %v700 = vshrl.u32 %v699, 7
  %v701 = vsub.s32 %v698, %v700
  %v702 = vrot.slane %v694, %v701
  %v704 = vunpack.c.l.s4 1966171168
  %v705 = vunpack.c.0.s8 %v704
  %v706 = vlaneseq
  %v707 = vshrl.u32 %v706, 7
  %v708 = vsub.s32 %v705, %v707
  %v709 = vrot.slane %v695, %v708
  %v710 = vcombine.low %v702, %v709
  %v712 = vunpack.c.l.s4 1966171168
  %v713 = vunpack.c.0.s8 %v712
  %v714 = vlaneseq
  %v715 = vshrl.u32 %v714, 7
  %v716 = vsub.s32 %v713, %v715
  %v717 = vrot.slane %v710, %v716
  %v719 = vlaneseq
  %vm720 = vcmp.ge.s32.totalorder %v719, 0
  %vm721 = vcmp.lt.s32.totalorder %v719, 512
  %vm722 = vmand %vm720, %vm721
  %723 = vst.msk [vmem:[%s3] ss:$4 sm:$0xf] %vm722, %v717
  %v728 = vcombine.low %v558, %v567
  %v729 = vcombine.low %v576, %v585
  %v731 = vunpack.c.l.s4 1966171168
  %v732 = vunpack.c.0.s8 %v731
  %v733 = vlaneseq
  %v734 = vshrl.u32 %v733, 7
  %v735 = vsub.s32 %v732, %v734
  %v736 = vrot.slane %v728, %v735
  %v738 = vunpack.c.l.s4 1966171168
  %v739 = vunpack.c.0.s8 %v738
  %v740 = vlaneseq
  %v741 = vshrl.u32 %v740, 7
  %v742 = vsub.s32 %v739, %v741
  %v743 = vrot.slane %v729, %v742
  %v744 = vcombine.low %v736, %v743
  %v746 = vunpack.c.l.s4 1966171168
  %v747 = vunpack.c.0.s8 %v746
  %v748 = vlaneseq
  %v749 = vshrl.u32 %v748, 7
  %v750 = vsub.s32 %v747, %v749
  %v751 = vrot.slane %v744, %v750
  %s753 = scalar_lea.vmem %s3, 1
  %754 = vst.msk [vmem:[%s753] ss:$4 sm:$0xf] %vm722, %v751
  %v759 = vcombine.low %v610, %v619
  %v760 = vcombine.low %v628, %v637
  %v762 = vunpack.c.l.s4 1966171168
  %v763 = vunpack.c.0.s8 %v762
  %v764 = vlaneseq
  %v765 = vshrl.u32 %v764, 7
  %v766 = vsub.s32 %v763, %v765
  %v767 = vrot.slane %v759, %v766
  %v769 = vunpack.c.l.s4 1966171168
  %v770 = vunpack.c.0.s8 %v769
  %v771 = vlaneseq
  %v772 = vshrl.u32 %v771, 7
  %v773 = vsub.s32 %v770, %v772
  %v774 = vrot.slane %v760, %v773
  %v775 = vcombine.low %v767, %v774
  %v777 = vunpack.c.l.s4 1966171168
  %v778 = vunpack.c.0.s8 %v777
  %v779 = vlaneseq
  %v780 = vshrl.u32 %v779, 7
  %v781 = vsub.s32 %v778, %v780
  %v782 = vrot.slane %v775, %v781
  %s784 = scalar_lea.vmem %s3, 2
  %785 = vst.msk [vmem:[%s784] ss:$4 sm:$0xf] %vm722, %v782
  %v790 = vcombine.low %v662, %v671
  %v791 = vcombine.low %v680, %v689
  %v793 = vunpack.c.l.s4 1966171168
  %v794 = vunpack.c.0.s8 %v793
  %v795 = vlaneseq
  %v796 = vshrl.u32 %v795, 7
  %v797 = vsub.s32 %v794, %v796
  %v798 = vrot.slane %v790, %v797
  %v800 = vunpack.c.l.s4 1966171168
  %v801 = vunpack.c.0.s8 %v800
  %v802 = vlaneseq
  %v803 = vshrl.u32 %v802, 7
  %v804 = vsub.s32 %v801, %v803
  %v805 = vrot.slane %v791, %v804
  %v806 = vcombine.low %v798, %v805
  %v808 = vunpack.c.l.s4 1966171168
  %v809 = vunpack.c.0.s8 %v808
  %v810 = vlaneseq
  %v811 = vshrl.u32 %v810, 7
  %v812 = vsub.s32 %v809, %v811
  %v813 = vrot.slane %v806, %v812
  %s815 = scalar_lea.vmem %s3, 3
  %816 = vst.msk [vmem:[%s815] ss:$4 sm:$0xf] %vm722, %v813
  // Predicated region
  $region14: #{binary_seesaw_loss.1} parent=0 // pred_check
    _
  $region15: #{binary_seesaw_loss.1} parent=0 // pred_check_branch
    %818 = sbr.rel (0) target = $region17
  $region16: #{binary_seesaw_loss.1} parent=0 // pred_region
    _
  $region17: #{binary_seesaw_loss.1} parent=0 // pred_fallthru
    _
  // Predicated region
  $region18: #{binary_seesaw_loss.1} parent=0 // pred_check
    _
  $region19: #{binary_seesaw_loss.1} parent=0 // pred_check_branch
    %820 = sbr.rel (0) target = $region21
  $region20: #{binary_seesaw_loss.1} parent=0 // pred_region
    _
  $region21: #{binary_seesaw_loss.1} parent=0 // pred_fallthru
    _

</llo_original>
